<compile_context>
chip_gen: v7x
topology: tpu7x:2x2x1
jax: 0.10.0
libtpu: 0.0.40
codegen_flags: <defaults>
</compile_context>

<pallas_src>
import jax
import jax.numpy as jnp
from jax.experimental import pallas as pl
from jax.experimental.pallas import tpu as pltpu

_LANES = 128


def _make_kernel(rows, tile_rows, nblocks, needs_mask):
    k = tile_rows // 8          # sublane-groups per tile (tile_rows % 8 == 0)
    last = nblocks - 1
    last_row0 = last * tile_rows

    def kernel(yt_ref, yp_ref, out_ref,
               acc_sum, acc_maxt, acc_mint, acc_maxp, acc_minp):
        i = pl.program_id(0)

        @pl.when(i == 0)
        def _init():
            acc_sum[...] = jnp.zeros_like(acc_sum)
            acc_maxt[...] = jnp.full_like(acc_maxt, -jnp.inf)
            acc_mint[...] = jnp.full_like(acc_mint, jnp.inf)
            acc_maxp[...] = jnp.full_like(acc_maxp, -jnp.inf)
            acc_minp[...] = jnp.full_like(acc_minp, jnp.inf)

        # Cast kept for bf16 inputs (no-op for f32).
        yt = yt_ref[...].astype(jnp.float32)
        yp = yp_ref[...].astype(jnp.float32)
        diff = yp - yt

        def _accumulate(d, yt_mx, yt_mn, yp_mx, yp_mn):
            # Fold the (tile_rows, 128) tile down to (8, 128) with pure
            # elementwise (VPU) ops and accumulate into VMEM scratch; no XLU
            # reductions and no output stores in the hot path.
            acc_sum[...] = acc_sum[...] + d.reshape(k, 8, _LANES).sum(axis=0)
            acc_maxt[...] = jnp.maximum(acc_maxt[...],
                                        yt_mx.reshape(k, 8, _LANES).max(axis=0))
            acc_mint[...] = jnp.minimum(acc_mint[...],
                                        yt_mn.reshape(k, 8, _LANES).min(axis=0))
            acc_maxp[...] = jnp.maximum(acc_maxp[...],
                                        yp_mx.reshape(k, 8, _LANES).max(axis=0))
            acc_minp[...] = jnp.minimum(acc_minp[...],
                                        yp_mn.reshape(k, 8, _LANES).min(axis=0))

        if needs_mask:
            # Steady-state: full tiles take the unmasked path (no iota, no
            # compares, no selects).
            @pl.when(i < last)
            def _full_tile():
                _accumulate(diff, yt, yt, yp, yp)

            # Only the final partial tile pays the masking cost.  It reads
            # past the logical end of the (rows, 128) slab, so out-of-range
            # rows (arbitrary data) are selected to identity fills before
            # accumulating.
            @pl.when(i == last)
            def _partial_tile():
                local = jax.lax.broadcasted_iota(
                    jnp.int32, (tile_rows, _LANES), 0)
                valid = (last_row0 + local) < rows
                _accumulate(jnp.where(valid, diff, 0.0),
                            jnp.where(valid, yt, -jnp.inf),
                            jnp.where(valid, yt, jnp.inf),
                            jnp.where(valid, yp, -jnp.inf),
                            jnp.where(valid, yp, jnp.inf))
        else:
            _accumulate(diff, yt, yt, yp, yp)

        @pl.when(i == last)
        def _finalize():
            # One XLU reduction per stat, once per kernel, then a single
            # lane-dense (8, 128) store.
            s = jnp.sum(acc_sum[...])
            mx_t = jnp.max(acc_maxt[...])
            mn_t = jnp.min(acc_mint[...])
            mx_p = jnp.max(acc_maxp[...])
            mn_p = jnp.min(acc_minp[...])
            rowid = jax.lax.broadcasted_iota(jnp.int32, (8, _LANES), 0)
            blk = jnp.where(rowid == 0, s, 0.0)
            blk = jnp.where(rowid == 1, mx_t, blk)
            blk = jnp.where(rowid == 2, mn_t, blk)
            blk = jnp.where(rowid == 3, mx_p, blk)
            blk = jnp.where(rowid == 4, mn_p, blk)
            out_ref[...] = blk

    return kernel


def mself_pallas(y_true, y_pred, *, tile_rows=8192):
    """Returns (loss, max_true, min_true, max_pred, min_pred) as f32 scalars.

    loss == sum(y_pred - y_true), matching MSELF.forward; the max/min stats
    correspond to the module's print() statements.
    """
    assert y_true.shape == y_pred.shape
    # +/-inf identity fills and f32 accumulators assume floating-point inputs.
    assert jnp.issubdtype(y_true.dtype, jnp.floating)
    assert jnp.issubdtype(y_pred.dtype, jnp.floating)

    total = y_true.size
    flat_t = y_true.reshape(-1)
    flat_p = y_pred.reshape(-1)
    rows = total // _LANES
    rem = total - rows * _LANES

    if rows == 0:
        # Too small for a lane-dense slab; pure JAX fallback.
        t = flat_t.astype(jnp.float32)
        p = flat_p.astype(jnp.float32)
        return (jnp.sum(p - t), jnp.max(t), jnp.min(t), jnp.max(p), jnp.min(p))

    # Tile sizing: multiple of 8 sublanes, no larger than the (rounded) slab.
    rows8 = ((rows + 7) // 8) * 8
    tile_rows = max(8, min(int(tile_rows), rows8))
    tile_rows = ((tile_rows + 7) // 8) * 8

    nblocks = pl.cdiv(rows, tile_rows)
    # Masking is only needed when the last tile is partial; full tiles run the
    # unmasked steady-state path either way.
    needs_mask = (nblocks * tile_rows != rows)

    yt2 = flat_t[: rows * _LANES].reshape(rows, _LANES)
    yp2 = flat_p[: rows * _LANES].reshape(rows, _LANES)

    # Explicit scoped-VMEM budget: 2 inputs x 2 pipeline buffers x block plus
    # headroom for scratch/output.  Clamped so it also fits v7x's 64 MiB
    # physical VMEM and v5e's smaller default scoped limit is overridden.
    itemsize = max(jnp.dtype(y_true.dtype).itemsize,
                   jnp.dtype(y_pred.dtype).itemsize)
    block_bytes = tile_rows * _LANES * itemsize
    vmem_limit = min(max(4 * block_bytes + (4 << 20), 16 << 20), 48 << 20)

    kernel = _make_kernel(rows, tile_rows, nblocks, needs_mask)

    out = pl.pallas_call(
        kernel,
        out_shape=jax.ShapeDtypeStruct((8, _LANES), jnp.float32),
        grid=(nblocks,),
        in_specs=[
            pl.BlockSpec((tile_rows, _LANES), lambda i: (i, 0)),
            pl.BlockSpec((tile_rows, _LANES), lambda i: (i, 0)),
        ],
        out_specs=pl.BlockSpec((8, _LANES), lambda i: (0, 0)),
        scratch_shapes=[pltpu.VMEM((8, _LANES), jnp.float32)] * 5,
        compiler_params=pltpu.CompilerParams(
            dimension_semantics=("arbitrary",),
            vmem_limit_bytes=int(vmem_limit)),
    )(yt2, yp2)

    loss = out[0, 0]
    max_t = out[1, 0]
    min_t = out[2, 0]
    max_p = out[3, 0]
    min_p = out[4, 0]

    if rem:
        # Fold the sub-128-element remainder in plain JAX (< one vreg of work).
        tail_t = flat_t[rows * _LANES:].astype(jnp.float32)
        tail_p = flat_p[rows * _LANES:].astype(jnp.float32)
        loss = loss + jnp.sum(tail_p - tail_t)
        max_t = jnp.maximum(max_t, jnp.max(tail_t))
        min_t = jnp.minimum(min_t, jnp.min(tail_t))
        max_p = jnp.maximum(max_p, jnp.max(tail_p))
        min_p = jnp.minimum(min_p, jnp.min(tail_p))

    return loss, max_t, min_t, max_p, min_p


if __name__ == "__main__":
    key = jax.random.PRNGKey(0)
    k1, k2 = jax.random.split(key)
    # Segmentation-style NCHW inputs.
    y_true = jax.random.uniform(k1, (2, 4, 16, 16), dtype=jnp.float32)
    y_pred = jax.random.uniform(k2, (2, 4, 16, 16), dtype=jnp.float32)

    loss, max_t, min_t, max_p, min_p = mself_pallas(y_true, y_pred)
    jax.block_until_ready(loss)

    # Mirror the module's print statements (max/min of y_true and y_pred).
    print(max_t)
    print(min_t)
    print(max_p)
    print(min_p)

    # Correctness check against the pure-JAX reference.
    ref_loss = jnp.sum(y_pred - y_true)
    assert jnp.allclose(loss, ref_loss, atol=1e-4, rtol=1e-5), (loss, ref_loss)
    assert jnp.allclose(max_t, jnp.max(y_true)), (max_t, jnp.max(y_true))
    assert jnp.allclose(min_t, jnp.min(y_true)), (min_t, jnp.min(y_true))
    assert jnp.allclose(max_p, jnp.max(y_pred)), (max_p, jnp.max(y_pred))
    assert jnp.allclose(min_p, jnp.min(y_pred)), (min_p, jnp.min(y_pred))
    print("KERNEL_OK")
</pallas_src>

<mosaic_0001>
module attributes {stable_mosaic.version = 11 : i64} {
  func.func @kernel(%arg0: i32, %arg1: memref<16x128xf32, #tpu.memory_space<vmem>>, %arg2: memref<16x128xf32, #tpu.memory_space<vmem>>, %arg3: memref<8x128xf32, #tpu.memory_space<vmem>>, %arg4: memref<8x128xf32, #tpu.memory_space<vmem>>, %arg5: memref<8x128xf32, #tpu.memory_space<vmem>>, %arg6: memref<8x128xf32, #tpu.memory_space<vmem>>, %arg7: memref<8x128xf32, #tpu.memory_space<vmem>>, %arg8: memref<8x128xf32, #tpu.memory_space<vmem>>) attributes {dimension_semantics = [#tpu.dimension_semantics<arbitrary>], iteration_bounds = array<i64: 1>, scalar_prefetch = 0 : i64, scratch_operands = 5 : i64, tpu.core_type = #tpu.core_type<tc>, window_params = [{transform_indices = @transform_0, window_bounds = array<i64: 16, 128>}, {transform_indices = @transform_1, window_bounds = array<i64: 16, 128>}, {pipeline_mode = #tpu.pipeline_mode<synchronous>, transform_indices = @transform_2, window_bounds = array<i64: 8, 128>}]} {
    %c0_i32 = arith.constant 0 : i32
    %0 = arith.cmpi eq, %arg0, %c0_i32 : i32
    %1 = arith.extui %0 : i1 to i32
    %c0_i32_0 = arith.constant 0 : i32
    %2 = arith.cmpi ne, %1, %c0_i32_0 : i32
    scf.if %2 {
      %cst_30 = arith.constant 0.000000e+00 : f32
      %34 = vector.broadcast %cst_30 : f32 to vector<8x128xf32>
      %c0_31 = arith.constant 0 : index
      %c0_32 = arith.constant 0 : index
      %35 = vector.load %arg4[%c0_31, %c0_32] : memref<8x128xf32, #tpu.memory_space<vmem>>, vector<8x128xf32>
      tpu.vector_store %arg4[%c0_31, %c0_32], %34 {strides = array<i32>} : memref<8x128xf32, #tpu.memory_space<vmem>>, vector<8x128xf32>,
      %cst_33 = arith.constant 0xFF800000 : f32
      %36 = vector.broadcast %cst_33 : f32 to vector<8x128xf32>
      %c0_34 = arith.constant 0 : index
      %c0_35 = arith.constant 0 : index
      %37 = vector.load %arg5[%c0_34, %c0_35] : memref<8x128xf32, #tpu.memory_space<vmem>>, vector<8x128xf32>
      tpu.vector_store %arg5[%c0_34, %c0_35], %36 {strides = array<i32>} : memref<8x128xf32, #tpu.memory_space<vmem>>, vector<8x128xf32>,
      %cst_36 = arith.constant 0x7F800000 : f32
      %38 = vector.broadcast %cst_36 : f32 to vector<8x128xf32>
      %c0_37 = arith.constant 0 : index
      %c0_38 = arith.constant 0 : index
      %39 = vector.load %arg6[%c0_37, %c0_38] : memref<8x128xf32, #tpu.memory_space<vmem>>, vector<8x128xf32>
      tpu.vector_store %arg6[%c0_37, %c0_38], %38 {strides = array<i32>} : memref<8x128xf32, #tpu.memory_space<vmem>>, vector<8x128xf32>,
      %cst_39 = arith.constant 0xFF800000 : f32
      %40 = vector.broadcast %cst_39 : f32 to vector<8x128xf32>
      %c0_40 = arith.constant 0 : index
      %c0_41 = arith.constant 0 : index
      %41 = vector.load %arg7[%c0_40, %c0_41] : memref<8x128xf32, #tpu.memory_space<vmem>>, vector<8x128xf32>
      tpu.vector_store %arg7[%c0_40, %c0_41], %40 {strides = array<i32>} : memref<8x128xf32, #tpu.memory_space<vmem>>, vector<8x128xf32>,
      %cst_42 = arith.constant 0x7F800000 : f32
      %42 = vector.broadcast %cst_42 : f32 to vector<8x128xf32>
      %c0_43 = arith.constant 0 : index
      %c0_44 = arith.constant 0 : index
      %43 = vector.load %arg8[%c0_43, %c0_44] : memref<8x128xf32, #tpu.memory_space<vmem>>, vector<8x128xf32>
      tpu.vector_store %arg8[%c0_43, %c0_44], %42 {strides = array<i32>} : memref<8x128xf32, #tpu.memory_space<vmem>>, vector<8x128xf32>,
    } else {
    }
    %c0 = arith.constant 0 : index
    %c0_1 = arith.constant 0 : index
    %3 = vector.load %arg1[%c0, %c0_1] : memref<16x128xf32, #tpu.memory_space<vmem>>, vector<16x128xf32>
    %c0_2 = arith.constant 0 : index
    %c0_3 = arith.constant 0 : index
    %4 = vector.load %arg2[%c0_2, %c0_3] : memref<16x128xf32, #tpu.memory_space<vmem>>, vector<16x128xf32>
    %5 = arith.subf %4, %3 : vector<16x128xf32>
    %c0_4 = arith.constant 0 : index
    %c0_5 = arith.constant 0 : index
    %6 = vector.load %arg4[%c0_4, %c0_5] : memref<8x128xf32, #tpu.memory_space<vmem>>, vector<8x128xf32>
    %7 = vector.shape_cast %5 : vector<16x128xf32> to vector<2x8x128xf32>
    %cst = arith.constant dense<0.000000e+00> : vector<8x128xf32>
    %8 = vector.multi_reduction <add>, %7, %cst [0] : vector<2x8x128xf32> to vector<8x128xf32>
    %9 = arith.addf %6, %8 : vector<8x128xf32>
    %c0_6 = arith.constant 0 : index
    %c0_7 = arith.constant 0 : index
    %10 = vector.load %arg4[%c0_6, %c0_7] : memref<8x128xf32, #tpu.memory_space<vmem>>, vector<8x128xf32>
    tpu.vector_store %arg4[%c0_6, %c0_7], %9 {strides = array<i32>} : memref<8x128xf32, #tpu.memory_space<vmem>>, vector<8x128xf32>,
    %c0_8 = arith.constant 0 : index
    %c0_9 = arith.constant 0 : index
    %11 = vector.load %arg5[%c0_8, %c0_9] : memref<8x128xf32, #tpu.memory_space<vmem>>, vector<8x128xf32>
    %12 = vector.shape_cast %3 : vector<16x128xf32> to vector<2x8x128xf32>
    %cst_10 = arith.constant dense<0xFF800000> : vector<8x128xf32>
    %13 = vector.multi_reduction <maximumf>, %12, %cst_10 [0] : vector<2x8x128xf32> to vector<8x128xf32>
    %14 = arith.maximumf %11, %13 : vector<8x128xf32>
    %c0_11 = arith.constant 0 : index
    %c0_12 = arith.constant 0 : index
    %15 = vector.load %arg5[%c0_11, %c0_12] : memref<8x128xf32, #tpu.memory_space<vmem>>, vector<8x128xf32>
    tpu.vector_store %arg5[%c0_11, %c0_12], %14 {strides = array<i32>} : memref<8x128xf32, #tpu.memory_space<vmem>>, vector<8x128xf32>,
    %c0_13 = arith.constant 0 : index
    %c0_14 = arith.constant 0 : index
    %16 = vector.load %arg6[%c0_13, %c0_14] : memref<8x128xf32, #tpu.memory_space<vmem>>, vector<8x128xf32>
    %17 = vector.shape_cast %3 : vector<16x128xf32> to vector<2x8x128xf32>
    %cst_15 = arith.constant dense<0x7F800000> : vector<8x128xf32>
    %18 = vector.multi_reduction <minimumf>, %17, %cst_15 [0] : vector<2x8x128xf32> to vector<8x128xf32>
    %19 = arith.minimumf %16, %18 : vector<8x128xf32>
    %c0_16 = arith.constant 0 : index
    %c0_17 = arith.constant 0 : index
    %20 = vector.load %arg6[%c0_16, %c0_17] : memref<8x128xf32, #tpu.memory_space<vmem>>, vector<8x128xf32>
    tpu.vector_store %arg6[%c0_16, %c0_17], %19 {strides = array<i32>} : memref<8x128xf32, #tpu.memory_space<vmem>>, vector<8x128xf32>,
    %c0_18 = arith.constant 0 : index
    %c0_19 = arith.constant 0 : index
    %21 = vector.load %arg7[%c0_18, %c0_19] : memref<8x128xf32, #tpu.memory_space<vmem>>, vector<8x128xf32>
    %22 = vector.shape_cast %4 : vector<16x128xf32> to vector<2x8x128xf32>
    %cst_20 = arith.constant dense<0xFF800000> : vector<8x128xf32>
    %23 = vector.multi_reduction <maximumf>, %22, %cst_20 [0] : vector<2x8x128xf32> to vector<8x128xf32>
    %24 = arith.maximumf %21, %23 : vector<8x128xf32>
    %c0_21 = arith.constant 0 : index
    %c0_22 = arith.constant 0 : index
    %25 = vector.load %arg7[%c0_21, %c0_22] : memref<8x128xf32, #tpu.memory_space<vmem>>, vector<8x128xf32>
    tpu.vector_store %arg7[%c0_21, %c0_22], %24 {strides = array<i32>} : memref<8x128xf32, #tpu.memory_space<vmem>>, vector<8x128xf32>,
    %c0_23 = arith.constant 0 : index
    %c0_24 = arith.constant 0 : index
    %26 = vector.load %arg8[%c0_23, %c0_24] : memref<8x128xf32, #tpu.memory_space<vmem>>, vector<8x128xf32>
    %27 = vector.shape_cast %4 : vector<16x128xf32> to vector<2x8x128xf32>
    %cst_25 = arith.constant dense<0x7F800000> : vector<8x128xf32>
    %28 = vector.multi_reduction <minimumf>, %27, %cst_25 [0] : vector<2x8x128xf32> to vector<8x128xf32>
    %29 = arith.minimumf %26, %28 : vector<8x128xf32>
    %c0_26 = arith.constant 0 : index
    %c0_27 = arith.constant 0 : index
    %30 = vector.load %arg8[%c0_26, %c0_27] : memref<8x128xf32, #tpu.memory_space<vmem>>, vector<8x128xf32>
    tpu.vector_store %arg8[%c0_26, %c0_27], %29 {strides = array<i32>} : memref<8x128xf32, #tpu.memory_space<vmem>>, vector<8x128xf32>,
    %c0_i32_28 = arith.constant 0 : i32
    %31 = arith.cmpi eq, %arg0, %c0_i32_28 : i32
    %32 = arith.extui %31 : i1 to i32
    %c0_i32_29 = arith.constant 0 : i32
    %33 = arith.cmpi ne, %32, %c0_i32_29 : i32
    scf.if %33 {
      %c0_30 = arith.constant 0 : index
      %c0_31 = arith.constant 0 : index
      %34 = vector.load %arg4[%c0_30, %c0_31] : memref<8x128xf32, #tpu.memory_space<vmem>>, vector<8x128xf32>
      %35 = vector.shape_cast %34 : vector<8x128xf32> to vector<1x8x128xf32>
      %cst_32 = arith.constant dense<0.000000e+00> : vector<1xf32>
      %36 = vector.multi_reduction <add>, %35, %cst_32 [1, 2] : vector<1x8x128xf32> to vector<1xf32>
      %37 = vector.shape_cast %36 : vector<1xf32> to vector<1x1x1xf32>
      %38 = vector.extract %37[0, 0, 0] : f32 from vector<1x1x1xf32>
      %c0_33 = arith.constant 0 : index
      %c0_34 = arith.constant 0 : index
      %39 = vector.load %arg5[%c0_33, %c0_34] : memref<8x128xf32, #tpu.memory_space<vmem>>, vector<8x128xf32>
      %40 = vector.shape_cast %39 : vector<8x128xf32> to vector<1x8x128xf32>
      %cst_35 = arith.constant dense<0xFF800000> : vector<1xf32>
      %41 = vector.multi_reduction <maximumf>, %40, %cst_35 [1, 2] : vector<1x8x128xf32> to vector<1xf32>
      %42 = vector.shape_cast %41 : vector<1xf32> to vector<1x1x1xf32>
      %43 = vector.extract %42[0, 0, 0] : f32 from vector<1x1x1xf32>
      %c0_36 = arith.constant 0 : index
      %c0_37 = arith.constant 0 : index
      %44 = vector.load %arg6[%c0_36, %c0_37] : memref<8x128xf32, #tpu.memory_space<vmem>>, vector<8x128xf32>
      %45 = vector.shape_cast %44 : vector<8x128xf32> to vector<1x8x128xf32>
      %cst_38 = arith.constant dense<0x7F800000> : vector<1xf32>
      %46 = vector.multi_reduction <minimumf>, %45, %cst_38 [1, 2] : vector<1x8x128xf32> to vector<1xf32>
      %47 = vector.shape_cast %46 : vector<1xf32> to vector<1x1x1xf32>
      %48 = vector.extract %47[0, 0, 0] : f32 from vector<1x1x1xf32>
      %c0_39 = arith.constant 0 : index
      %c0_40 = arith.constant 0 : index
      %49 = vector.load %arg7[%c0_39, %c0_40] : memref<8x128xf32, #tpu.memory_space<vmem>>, vector<8x128xf32>
      %50 = vector.shape_cast %49 : vector<8x128xf32> to vector<1x8x128xf32>
      %cst_41 = arith.constant dense<0xFF800000> : vector<1xf32>
      %51 = vector.multi_reduction <maximumf>, %50, %cst_41 [1, 2] : vector<1x8x128xf32> to vector<1xf32>
      %52 = vector.shape_cast %51 : vector<1xf32> to vector<1x1x1xf32>
      %53 = vector.extract %52[0, 0, 0] : f32 from vector<1x1x1xf32>
      %c0_42 = arith.constant 0 : index
      %c0_43 = arith.constant 0 : index
      %54 = vector.load %arg8[%c0_42, %c0_43] : memref<8x128xf32, #tpu.memory_space<vmem>>, vector<8x128xf32>
      %55 = vector.shape_cast %54 : vector<8x128xf32> to vector<1x8x128xf32>
      %cst_44 = arith.constant dense<0x7F800000> : vector<1xf32>
      %56 = vector.multi_reduction <minimumf>, %55, %cst_44 [1, 2] : vector<1x8x128xf32> to vector<1xf32>
      %57 = vector.shape_cast %56 : vector<1xf32> to vector<1x1x1xf32>
      %58 = vector.extract %57[0, 0, 0] : f32 from vector<1x1x1xf32>
      %59 = tpu.iota {dimensions = array<i32: 0>} : vector<8x128xi32>
      %c0_i32_45 = arith.constant 0 : i32
      %60 = vector.broadcast %c0_i32_45 : i32 to vector<8x128xi32>
      %61 = arith.cmpi eq, %59, %60 : vector<8x128xi32>
      %cst_46 = arith.constant 0.000000e+00 : f32
      %62 = vector.broadcast %38 : f32 to vector<8x128xf32>
      %63 = vector.broadcast %cst_46 : f32 to vector<8x128xf32>
      %64 = arith.select %61, %62, %63 : vector<8x128xi1>, vector<8x128xf32>
      %c1_i32 = arith.constant 1 : i32
      %65 = vector.broadcast %c1_i32 : i32 to vector<8x128xi32>
      %66 = arith.cmpi eq, %59, %65 : vector<8x128xi32>
      %67 = vector.broadcast %43 : f32 to vector<8x128xf32>
      %68 = arith.select %66, %67, %64 : vector<8x128xi1>, vector<8x128xf32>
      %c2_i32 = arith.constant 2 : i32
      %69 = vector.broadcast %c2_i32 : i32 to vector<8x128xi32>
      %70 = arith.cmpi eq, %59, %69 : vector<8x128xi32>
      %71 = vector.broadcast %48 : f32 to vector<8x128xf32>
      %72 = arith.select %70, %71, %68 : vector<8x128xi1>, vector<8x128xf32>
      %c3_i32 = arith.constant 3 : i32
      %73 = vector.broadcast %c3_i32 : i32 to vector<8x128xi32>
      %74 = arith.cmpi eq, %59, %73 : vector<8x128xi32>
      %75 = vector.broadcast %53 : f32 to vector<8x128xf32>
      %76 = arith.select %74, %75, %72 : vector<8x128xi1>, vector<8x128xf32>
      %c4_i32 = arith.constant 4 : i32
      %77 = vector.broadcast %c4_i32 : i32 to vector<8x128xi32>
      %78 = arith.cmpi eq, %59, %77 : vector<8x128xi32>
      %79 = vector.broadcast %58 : f32 to vector<8x128xf32>
      %80 = arith.select %78, %79, %76 : vector<8x128xi1>, vector<8x128xf32>
      %c0_47 = arith.constant 0 : index
      %c0_48 = arith.constant 0 : index
      %81 = vector.load %arg3[%c0_47, %c0_48] : memref<8x128xf32, #tpu.memory_space<vmem>>, vector<8x128xf32>
      tpu.vector_store %arg3[%c0_47, %c0_48], %80 {strides = array<i32>} : memref<8x128xf32, #tpu.memory_space<vmem>>, vector<8x128xf32>,
    } else {
    }
    return
  }
  func.func @transform_0(%arg0: i32) -> (i32, i32) {
    %c0_i32 = arith.constant 0 : i32
    %c0_i32_0 = arith.constant 0 : i32
    return %arg0, %c0_i32 : i32, i32
  }
  func.func @transform_1(%arg0: i32) -> (i32, i32) {
    %c0_i32 = arith.constant 0 : i32
    %c0_i32_0 = arith.constant 0 : i32
    return %arg0, %c0_i32 : i32, i32
  }
  func.func @transform_2(%arg0: i32) -> (i32, i32) {
    %c0_i32 = arith.constant 0 : i32
    %c0_i32_0 = arith.constant 0 : i32
    %c0_i32_1 = arith.constant 0 : i32
    return %c0_i32, %c0_i32_0 : i32, i32
  }
}

</mosaic_0001>

<llo_original>
// kernel: tpu_custom_call.1
$region0: #{tpu_custom_call.1}
  #allocation0 [shape = 'u32[]', space=smem, size = 0x4, offset = 0x4, fixed_abs, tag = 'smem constant byte address 0x4 - core index']
  #allocation1 [shape = 'u32[144,128]{1,0:T(1,128)}', space=vmem, size = 0x12000, scoped, tag = 'internal scratch']
  #allocation2 [shape = 'f32[8,128]{1,0:T(8,128)}', space=vmem, size = 0x1000, scoped, tag = 'scratch operand']
  #allocation3 [shape = 'f32[8,128]{1,0:T(8,128)}', space=vmem, size = 0x1000, scoped, tag = 'scratch operand']
  #allocation4 [shape = 'f32[8,128]{1,0:T(8,128)}', space=vmem, size = 0x1000, scoped, tag = 'scratch operand']
  #allocation5 [shape = 'f32[8,128]{1,0:T(8,128)}', space=vmem, size = 0x1000, scoped, tag = 'scratch operand']
  #allocation6 [shape = 'f32[8,128]{1,0:T(8,128)}', space=vmem, size = 0x1000, scoped, tag = 'scratch operand']
  %s0 = inlined_call_operand.hbm [shape: f32[16,128], index: 0, kind: input, shape index: {}]
  %s1 = inlined_call_operand.hbm [shape: f32[16,128], index: 1, kind: input, shape index: {}]
  %s2 = inlined_call_operand.hbm [shape: f32[8,128], index: 2, kind: output, shape index: {}]
  %s3 = sld [smem:[#allocation0]]
  $region34: #{tpu_custom_call.1} parent=0
    _
  %s5 = ssub.s32 1, %s3
  %s6 = scalar_select 0, %s5, %s3
  $region1: #{tpu_custom_call.1} parent=0
    #allocation7 [shape = 'u8[8192]{0}', space=vmem, size = 0x2000, scoped, tag = 'input window, operand 0, single buffered']
    #allocation8 [shape = 's32[1]{0}', space=sflag, size = 0x4, scoped, tag = 'scoped memory for tpu_custom_call.1']
    #allocation9 [shape = 's32[1]{0}', space=sflag, size = 0x4, scoped, tag = 'scoped memory for tpu_custom_call.1']
    #allocation10 [shape = 'u8[8192]{0}', space=vmem, size = 0x2000, scoped, tag = 'input window, operand 1, single buffered']
    #allocation11 [shape = 's32[1]{0}', space=sflag, size = 0x4, scoped, tag = 'scoped memory for tpu_custom_call.1']
    #allocation12 [shape = 'u8[4096]{0}', space=vmem, size = 0x1000, scoped, tag = 'output window, operand 0, single buffered']
    %7 = vsyncpa [#allocation8], 0
    %8 = vsyncpa [#allocation11], 0
    %9 = vsyncpa [#allocation9], 0
    // Predicated region
    $region2: #{tpu_custom_call.1} parent=1 // pred_check
      _
    $region3: #{tpu_custom_call.1} parent=1 // pred_check_branch
      %11 = sbr.rel (0) target = $region5
    $region4: #{tpu_custom_call.1} parent=1 // pred_region
      %s13 = ssub.s32 256, 256
      %14 = vsyncadd [#allocation8], %s13
      %s15 = sshll.u32 [#allocation7], 4
      %s16 = int_to_ptr.vmem [resolvable:$true] %s15
      %21 = dma.hbm_to_vmem [thread:$0]  %s0, 256, %s16, [#allocation8], 128, 128, 8
    $region5: #{tpu_custom_call.1} parent=1 // pred_fallthru
      _
    // Predicated region
    $region6: #{tpu_custom_call.1} parent=1 // pred_check
      _
    $region7: #{tpu_custom_call.1} parent=1 // pred_check_branch
      %23 = sbr.rel (0) target = $region9
    $region8: #{tpu_custom_call.1} parent=1 // pred_region
      %s25 = ssub.s32 256, 256
      %26 = vsyncadd [#allocation11], %s25
      %s27 = sshll.u32 [#allocation10], 4
      %s28 = int_to_ptr.vmem [resolvable:$true] %s27
      %33 = dma.hbm_to_vmem [thread:$0]  %s1, 256, %s28, [#allocation11], 128, 128, 8
    $region9: #{tpu_custom_call.1} parent=1 // pred_fallthru
      _
    // Predicated region
    $region10: #{tpu_custom_call.1} parent=1 // pred_check
      _
    $region11: #{tpu_custom_call.1} parent=1 // pred_check_branch
      %35 = sbr.rel (0) target = $region13
    $region12: #{tpu_custom_call.1} parent=1 // pred_region
      %36 = dma.done [#allocation8], 256
    $region13: #{tpu_custom_call.1} parent=1 // pred_fallthru
      _
    // Predicated region
    $region14: #{tpu_custom_call.1} parent=1 // pred_check
      _
    $region15: #{tpu_custom_call.1} parent=1 // pred_check_branch
      %38 = sbr.rel (0) target = $region17
    $region16: #{tpu_custom_call.1} parent=1 // pred_region
      %39 = dma.done [#allocation11], 256
    $region17: #{tpu_custom_call.1} parent=1 // pred_fallthru
      _
    %p40 = scmp.eq.s32.totalorder 0, 0
    // Predicated region
    $region18: #{tpu_custom_call.1} parent=1 // pred_check
      %p41 = pneg %p40
    $region19: #{tpu_custom_call.1} parent=1 // pred_check_branch
      %43 = sbr.rel (%p41) target = $region21
    $region20: #{tpu_custom_call.1} parent=1 // pred_region
      %44 = vst [vmem:[#allocation2] sm:$0xff] 0.0
      %45 = vst [vmem:[#allocation3] sm:$0xff] -inf
      %46 = vst [vmem:[#allocation4] sm:$0xff] inf
      %47 = vst [vmem:[#allocation5] sm:$0xff] -inf
      %48 = vst [vmem:[#allocation6] sm:$0xff] inf
    $region21: #{tpu_custom_call.1} parent=1 // pred_fallthru
      _
    %v49 = vld [vmem:[#allocation7] sm:$0xff]
    %v50 = vld [vmem:[#allocation7 + $0x8] sm:$0xff]
    %v51 = vld [vmem:[#allocation10] sm:$0xff]
    %v52 = vld [vmem:[#allocation10 + $0x8] sm:$0xff]
    %v53 = vsub.f32 %v51, %v49
    %v54 = vsub.f32 %v52, %v50
    %v55 = vld [vmem:[#allocation2] sm:$0xff]
    %v56 = vadd.f32 %v53, %v54
    %v57 = vadd.f32 %v55, %v56
    %58 = vst [vmem:[#allocation2] sm:$0xff] %v57
    %v59 = vld [vmem:[#allocation3] sm:$0xff]
    %v60 = vmax.f32 %v49, %v50
    %v61 = vmax.f32 %v59, %v60
    %62 = vst [vmem:[#allocation3] sm:$0xff] %v61
    %v63 = vld [vmem:[#allocation4] sm:$0xff]
    %v64 = vmin.f32 %v49, %v50
    %v65 = vmin.f32 %v63, %v64
    %66 = vst [vmem:[#allocation4] sm:$0xff] %v65
    %v67 = vld [vmem:[#allocation5] sm:$0xff]
    %v68 = vmax.f32 %v51, %v52
    %v69 = vmax.f32 %v67, %v68
    %70 = vst [vmem:[#allocation5] sm:$0xff] %v69
    %v71 = vld [vmem:[#allocation6] sm:$0xff]
    %v72 = vmin.f32 %v51, %v52
    %v73 = vmin.f32 %v71, %v72
    %74 = vst [vmem:[#allocation6] sm:$0xff] %v73
    // Predicated region
    $region22: #{tpu_custom_call.1} parent=1 // pred_check
      %p75 = pneg %p40
    $region23: #{tpu_custom_call.1} parent=1 // pred_check_branch
      %77 = sbr.rel (%p75) target = $region25
    $region24: #{tpu_custom_call.1} parent=1 // pred_region
      %v78 = vld [vmem:[#allocation2] sm:$0xff]
      %79 = vadd.xlane.f32.xlu0 %v78
      %v80 = vpop.xlane.xlu0 %79
      %v81 = vrot.slane %v80, 4
      %v82 = vadd.f32 %v80, %v81
      %v83 = vrot.slane %v82, 2
      %v84 = vadd.f32 %v82, %v83
      %v85 = vrot.slane %v84, 1
      %v86 = vadd.f32 %v84, %v85
      %s87 = vtos %v86
      %v88 = vld [vmem:[#allocation3] sm:$0xff]
      %89 = vmax.xlane.f32.xlu0 %v88
      %v90 = vpop.xlane.xlu0 %89
      %v91 = vrot.slane %v90, 4
      %v92 = vmax.f32 %v90, %v91
      %v93 = vrot.slane %v92, 2
      %v94 = vmax.f32 %v92, %v93
      %v95 = vrot.slane %v94, 1
      %v96 = vmax.f32 %v94, %v95
      %s97 = vtos %v96
      %v98 = vld [vmem:[#allocation4] sm:$0xff]
      %99 = vmin.xlane.f32.xlu0 %v98
      %v100 = vpop.xlane.xlu0 %99
      %v101 = vrot.slane %v100, 4
      %v102 = vmin.f32 %v100, %v101
      %v103 = vrot.slane %v102, 2
      %v104 = vmin.f32 %v102, %v103
      %v105 = vrot.slane %v104, 1
      %v106 = vmin.f32 %v104, %v105
      %s107 = vtos %v106
      %v108 = vld [vmem:[#allocation5] sm:$0xff]
      %109 = vmax.xlane.f32.xlu0 %v108
      %v110 = vpop.xlane.xlu0 %109
      %v111 = vrot.slane %v110, 4
      %v112 = vmax.f32 %v110, %v111
      %v113 = vrot.slane %v112, 2
      %v114 = vmax.f32 %v112, %v113
      %v115 = vrot.slane %v114, 1
      %v116 = vmax.f32 %v114, %v115
      %s117 = vtos %v116
      %v118 = vld [vmem:[#allocation6] sm:$0xff]
      %119 = vmin.xlane.f32.xlu0 %v118
      %v120 = vpop.xlane.xlu0 %119
      %v121 = vrot.slane %v120, 4
      %v122 = vmin.f32 %v120, %v121
      %v123 = vrot.slane %v122, 2
      %v124 = vmin.f32 %v122, %v123
      %v125 = vrot.slane %v124, 1
      %v126 = vmin.f32 %v124, %v125
      %s127 = vtos %v126
      %v128 = vlaneseq
      %v129 = vshrl.u32 %v128, 7
      %vm130 = vcmp.eq.s32.totalorder %v129, 0
      %v131 = vstv %s87
      %v132 = vsel %vm130, %v131, 0.0
      %vm133 = vcmp.eq.s32.totalorder %v129, 1
      %v134 = vstv %s97
      %v135 = vsel %vm133, %v134, %v132
      %vm136 = vcmp.eq.s32.totalorder %v129, 2
      %v137 = vstv %s107
      %v138 = vsel %vm136, %v137, %v135
      %vm139 = vcmp.eq.s32.totalorder %v129, 3
      %v140 = vstv %s117
      %v141 = vsel %vm139, %v140, %v138
      %vm142 = vcmp.eq.s32.totalorder %v129, 4
      %v143 = vstv %s127
      %v144 = vsel %vm142, %v143, %v141
      %145 = vst [vmem:[#allocation12] sm:$0xff] %v144
    $region25: #{tpu_custom_call.1} parent=1 // pred_fallthru
      _
    // Predicated region
    $region26: #{tpu_custom_call.1} parent=1 // pred_check
      _
    $region27: #{tpu_custom_call.1} parent=1 // pred_check_branch
      %147 = sbr.rel (0) target = $region29
    $region28: #{tpu_custom_call.1} parent=1 // pred_region
      %s149 = ssub.s32 128, 128
      %150 = vsyncadd [#allocation9], %s149
      %s152 = sshll.u32 [#allocation12], 4
      %s153 = int_to_ptr.vmem [resolvable:$true] %s152
      %155 = dma.vmem_to_hbm [thread:$0]  %s153, 128, %s2, [#allocation9]
    $region29: #{tpu_custom_call.1} parent=1 // pred_fallthru
      _
    // Predicated region
    $region30: #{tpu_custom_call.1} parent=1 // pred_check
      _
    $region31: #{tpu_custom_call.1} parent=1 // pred_check_branch
      %157 = sbr.rel (0) target = $region33
    $region32: #{tpu_custom_call.1} parent=1 // pred_region
      %158 = dma.done [#allocation9], 128
    $region33: #{tpu_custom_call.1} parent=1 // pred_fallthru
      _
    %159 = vsyncpa [#allocation8], 1
    %160 = vsyncpa [#allocation11], 1
    %161 = vsyncpa [#allocation9], 1

</llo_original>
